<compile_context>
chip_gen: v7x
topology: tpu7x:2x2x1
jax: 0.10.0
libtpu: 0.0.40
codegen_flags: <defaults>
</compile_context>

<pallas_src>
import functools

import jax
import jax.numpy as jnp
from jax import lax
from jax.experimental import pallas as pl
from jax.experimental.pallas import tpu as pltpu


def _cdiv(a, b):
    return (a + b - 1) // b


def _xy_dfl_kernel(pred_ref, aux_ref, out_ref, *, reg_max, n_coords, m_total):
    """Per-anchor weighted DFL loss; one lane-dense output block per grid step.

    pred_ref: (TM, n_coords*(reg_max+1))  distribution logits, natural layout
    aux_ref:  (n_coords+1, TM)            rows 0..n_coords-1: fractional bin
                                          targets; row n_coords: per-anchor
                                          weight (target_scores.sum(-1)*fg).
    out_ref:  (1, TM)                     per-anchor weighted loss (lane-dense).
    """
    r1 = reg_max + 1
    tm = pred_ref.shape[0]

    # Validity mask for (possibly overhanging) tail blocks: anchors past the
    # true extent read stale VMEM, so force their weight to zero.
    start = pl.program_id(0) * tm
    lane = lax.broadcasted_iota(jnp.int32, (1, tm), 1)
    valid = (start + lane) < m_total

    # Natural-layout block -> lane-dense (bins on sublanes, anchors on lanes).
    # There is no matmul in this kernel, so the XLU transpose is effectively
    # free, and it replaces the wrapper-side XLA transpose of pred.
    pred = jnp.transpose(pred_ref[...].astype(jnp.float32))     # (dist_feat, TM)

    aux = aux_ref[...]                                          # (n_coords+1, TM)
    w = jnp.where(valid, aux[n_coords:n_coords + 1, :], 0.0)    # (1, TM)

    # float bin index along sublanes, shared by all coordinates (hoisted).
    binf = lax.broadcasted_iota(jnp.int32, (r1, tm), 0).astype(jnp.float32)

    dfl = jnp.zeros((1, tm), jnp.float32)
    for c in range(n_coords):                                   # static, n_coords == 2
        logits = pred[c * r1:(c + 1) * r1, :]                   # (r1, TM)
        m = jnp.max(logits, axis=0, keepdims=True)
        lse = m + jnp.log(jnp.sum(jnp.exp(logits - m), axis=0, keepdims=True))
        t = aux[c:c + 1, :]                                     # (1, TM)
        # Tent weight: sel[b] = max(0, 1 - |b - t|) == wl at floor(t), wr at
        # floor(t)+1, 0 elsewhere (wr == 0 at t == reg_max).  Since wl+wr == 1,
        # the two cross-entropies fuse to lse - sum(sel * logits).
        sel = jnp.maximum(1.0 - jnp.abs(binf - t), 0.0)
        picked = jnp.sum(sel * logits, axis=0, keepdims=True)
        dfl = dfl + (lse - picked)

    per_anchor = dfl * (1.0 / float(n_coords))   # .mean(-1, keepdim=True) over coords
    # w != 0 guard: masked-out / padded / overhanging anchors contribute exactly
    # 0 even if their targets or logits are non-finite (NaN * 0 would otherwise
    # poison the global sum).
    out_ref[...] = jnp.where(w != 0.0, per_anchor * w, 0.0)


def xy_loss(pred_dist, pred_pos, target_pos_distri, target_scores,
            target_scores_sum, fg_mask, *, reg_max, use_dfl=False, tm=4096):
    """JAX/Pallas equivalent of XYLoss.forward -> (loss_dfl, loss_dfl).

    pred_dist is consumed in its native dtype and natural (B, N, dist_feat)
    layout (bf16 producers halve the dominant HBM stream).  Callers must keep
    target_scores_sum > 0 (as the training loop does); the `loss_sum != 0`
    gate mirrors the PyTorch module, nothing more.
    """
    del pred_pos  # unused by the reference forward
    if not use_dfl:
        z = jnp.float32(0.0)
        return z, z

    B, N, dist_feat = pred_dist.shape
    n_coords = target_pos_distri.shape[-1]
    r1 = reg_max + 1
    assert dist_feat == n_coords * r1
    M = B * N

    # Big tensor: free reshape only, no copy, no transpose, native dtype.
    pred2d = pred_dist.reshape(M, dist_feat)

    # Fused lane-dense side-band: fractional bin targets + per-anchor weight
    # (target_scores.sum(-1) * fg_mask; boolean indexing == mask-as-multiply
    # for a global sum).  Tiny ((n_coords+1)*M floats), so this wrapper
    # transpose/concat is negligible -- unlike pred, which we never touch.
    weight = (target_scores.astype(jnp.float32).reshape(M, -1).sum(-1)
              * fg_mask.reshape(M).astype(jnp.float32))
    aux = jnp.concatenate(
        [target_pos_distri.reshape(M, n_coords).astype(jnp.float32).T,
         weight.reshape(1, M)], axis=0)                          # (n_coords+1, M)

    # Lane tile: large (>=85% HBM roofline at >=1024 lanes), multiple of 128,
    # never larger than the problem; tail blocks overhang and are masked.
    tm = max(128, min(tm, M) // 128 * 128)
    if tm > M:                      # tiny problem (M < 128): pad one full block
        pad = tm - M
        pred2d = jnp.pad(pred2d, ((0, pad), (0, 0)))
        aux = jnp.pad(aux, ((0, 0), (0, pad)))
    n_blk = _cdiv(M, tm)

    kernel = functools.partial(_xy_dfl_kernel, reg_max=reg_max,
                               n_coords=n_coords, m_total=M)

    per_anchor = pl.pallas_call(
        kernel,
        out_shape=jax.ShapeDtypeStruct((1, n_blk * tm), jnp.float32),
        grid_spec=pltpu.PrefetchScalarGridSpec(
            num_scalar_prefetch=0,
            grid=(n_blk,),
            in_specs=[
                pl.BlockSpec((tm, dist_feat), lambda i: (i, 0)),
                pl.BlockSpec((n_coords + 1, tm), lambda i: (0, i)),
            ],
            out_specs=pl.BlockSpec((1, tm), lambda i: (0, i)),
        ),
        compiler_params=pltpu.CompilerParams(
            # single parallel axis: serial loop on v5e/v6e (1 TC), automatically
            # split across both TensorCores on v7x.
            dimension_semantics=("parallel",),
            # headroom for the f32 upcast + in-kernel transpose temporaries on
            # v5e (16 MiB scoped default); well under physical on all gens.
            vmem_limit_bytes=32 * 1024 * 1024),
    )(pred2d, aux)

    loss_sum = per_anchor.sum()
    # loss = sum / target_scores_sum if sum != 0 else 0 (matches the module)
    loss = jnp.where(loss_sum != 0.0, loss_sum / target_scores_sum, 0.0)
    return loss, loss


def _xy_loss_ref(pred_dist, target_pos_distri, target_scores,
                 target_scores_sum, fg_mask, reg_max):
    """Pure-JAX reference mirroring the PyTorch semantics (mask-as-multiply)."""
    B, N, _ = pred_dist.shape
    r1 = reg_max + 1
    n_coords = target_pos_distri.shape[-1]
    M = B * N

    pred = pred_dist.reshape(M, n_coords, r1).astype(jnp.float32)
    tgt = target_pos_distri.reshape(M, n_coords).astype(jnp.float32)
    fg = fg_mask.reshape(M).astype(jnp.float32)
    weight = target_scores.astype(jnp.float32).reshape(M, -1).sum(-1)

    tl = jnp.floor(tgt).astype(jnp.int32)
    tr = tl + 1
    wl = (tl + 1).astype(jnp.float32) - tgt
    wr = 1.0 - wl
    logp = jax.nn.log_softmax(pred, axis=-1)
    ce_l = -jnp.take_along_axis(logp, tl[..., None], axis=-1)[..., 0]
    ce_r = -jnp.take_along_axis(logp, tr[..., None], axis=-1)[..., 0]
    df = (ce_l * wl + ce_r * wr).mean(-1)
    s = jnp.sum(df * weight * fg)
    return jnp.where(s != 0.0, s / target_scores_sum, 0.0)


if __name__ == "__main__":
    reg_max = 15          # -> reg_max + 1 = 16 bins
    n_coords = 2          # XY
    nc = 4                # classes in target_scores

    def make_inputs(key, B, N, pred_dtype=jnp.float32):
        k1, k2, k3, k4 = jax.random.split(key, 4)
        pred_dist = jax.random.normal(
            k1, (B, N, n_coords * (reg_max + 1)), jnp.float32).astype(pred_dtype)
        pred_pos = jnp.zeros((B, N, n_coords), jnp.float32)  # unused by forward
        # targets strictly inside [0, reg_max) so tl+1 is a valid class index
        target_pos_distri = jax.random.uniform(
            k2, (B, N, n_coords), minval=0.0, maxval=reg_max - 0.01)
        target_scores = jax.random.uniform(k3, (B, N, nc), jnp.float32)
        fg_mask = jax.random.bernoulli(k4, 0.3, (B, N))
        tss = jnp.maximum(target_scores.sum(), 1.0)
        return pred_dist, pred_pos, target_pos_distri, target_scores, tss, fg_mask

    keys = jax.random.split(jax.random.PRNGKey(0), 3)

    # Case 1: small shapes (B=2, N=64 -> M=128), single exact block.
    a = make_inputs(keys[0], 2, 64)
    loss_dfl, loss_dfl2 = xy_loss(*a, reg_max=reg_max, use_dfl=True)
    jax.block_until_ready(loss_dfl)
    ref = _xy_loss_ref(a[0], a[2], a[3], a[4], a[5], reg_max)
    assert jnp.allclose(loss_dfl, ref, rtol=1e-4, atol=1e-5), (loss_dfl, ref)
    assert jnp.allclose(loss_dfl, loss_dfl2)

    # Case 1b: NaN targets on masked-out anchors must not poison the sum
    # (the in-kernel `w != 0` guard keeps their contribution at exactly 0).
    tgt_nan = jnp.where(a[5][..., None], a[2], jnp.nan)
    loss_nan, _ = xy_loss(a[0], a[1], tgt_nan, a[3], a[4], a[5],
                          reg_max=reg_max, use_dfl=True)
    jax.block_until_ready(loss_nan)
    assert jnp.allclose(loss_nan, ref, rtol=1e-4, atol=1e-5), (loss_nan, ref)

    # Case 2: M not a multiple of the tile (overhanging edge blocks + masking).
    b = make_inputs(keys[1], 3, 500)   # M = 1500
    loss_b, _ = xy_loss(*b, reg_max=reg_max, use_dfl=True, tm=512)
    jax.block_until_ready(loss_b)
    ref_b = _xy_loss_ref(b[0], b[2], b[3], b[4], b[5], reg_max)
    assert jnp.allclose(loss_b, ref_b, rtol=1e-4, atol=1e-5), (loss_b, ref_b)

    # Case 3: bf16 logits (halves the dominant HBM stream), default tile size.
    c = make_inputs(keys[2], 2, 2048, pred_dtype=jnp.bfloat16)   # M = 4096
    loss_c, _ = xy_loss(*c, reg_max=reg_max, use_dfl=True)
    jax.block_until_ready(loss_c)
    ref_c = _xy_loss_ref(c[0], c[2], c[3], c[4], c[5], reg_max)
    assert jnp.allclose(loss_c, ref_c, rtol=2e-4, atol=1e-5), (loss_c, ref_c)

    # use_dfl=False path (module default) -> zeros
    z0, z1 = xy_loss(*a, reg_max=reg_max, use_dfl=False)
    assert float(z0) == 0.0 and float(z1) == 0.0

    print("KERNEL_OK")
</pallas_src>

<mosaic_0001>
module attributes {stable_mosaic.version = 11 : i64} {
  func.func @_xy_dfl_kernel(%arg0: i32, %arg1: memref<128x32xf32, #tpu.memory_space<vmem>>, %arg2: memref<3x128xf32, #tpu.memory_space<vmem>>, %arg3: memref<1x128xf32, #tpu.memory_space<vmem>>) attributes {dimension_semantics = [#tpu.dimension_semantics<parallel>], iteration_bounds = array<i64: 1>, scalar_prefetch = 0 : i64, scratch_operands = 0 : i64, tpu.core_type = #tpu.core_type<tc>, window_params = [{transform_indices = @transform_0, window_bounds = array<i64: 128, 32>}, {transform_indices = @transform_1, window_bounds = array<i64: 3, 128>}, {transform_indices = @transform_2, window_bounds = array<i64: 1, 128>}]} {
    %c128_i32 = arith.constant 128 : i32
    %0 = arith.muli %arg0, %c128_i32 : i32
    %1 = tpu.iota {dimensions = array<i32: 1>} : vector<1x128xi32>
    %2 = vector.broadcast %0 : i32 to vector<1x128xi32>
    %3 = arith.addi %2, %1 : vector<1x128xi32>
    %c128_i32_0 = arith.constant 128 : i32
    %4 = vector.broadcast %c128_i32_0 : i32 to vector<1x128xi32>
    %5 = arith.cmpi slt, %3, %4 : vector<1x128xi32>
    %c0 = arith.constant 0 : index
    %c0_1 = arith.constant 0 : index
    %6 = vector.load %arg1[%c0, %c0_1] : memref<128x32xf32, #tpu.memory_space<vmem>>, vector<128x32xf32>
    %7 = tpu.transpose %6, [1, 0] : vector<128x32xf32> -> vector<32x128xf32>
    %c0_2 = arith.constant 0 : index
    %c0_3 = arith.constant 0 : index
    %8 = vector.load %arg2[%c0_2, %c0_3] : memref<3x128xf32, #tpu.memory_space<vmem>>, vector<3x128xf32>
    %9 = vector.extract_strided_slice %8 {offsets = [2, 0], sizes = [1, 128], strides = [1, 1]} : vector<3x128xf32> to vector<1x128xf32>
    %cst = arith.constant 0.000000e+00 : f32
    %10 = vector.broadcast %cst : f32 to vector<1x128xf32>
    %11 = arith.select %5, %9, %10 : vector<1x128xi1>, vector<1x128xf32>
    %12 = tpu.iota {dimensions = array<i32: 0>} : vector<16x128xi32>
    %13 = arith.sitofp %12 : vector<16x128xi32> to vector<16x128xf32>
    %cst_4 = arith.constant 0.000000e+00 : f32
    %14 = vector.broadcast %cst_4 : f32 to vector<1x128xf32>
    %15 = vector.extract_strided_slice %7 {offsets = [0, 0], sizes = [16, 128], strides = [1, 1]} : vector<32x128xf32> to vector<16x128xf32>
    %cst_5 = arith.constant dense<0xFF800000> : vector<128xf32>
    %16 = vector.multi_reduction <maximumf>, %15, %cst_5 [0] : vector<16x128xf32> to vector<128xf32>
    %17 = vector.shape_cast %16 : vector<128xf32> to vector<1x128xf32>
    %18 = vector.broadcast %17 : vector<1x128xf32> to vector<16x128xf32>
    %19 = arith.subf %15, %18 : vector<16x128xf32>
    %20 = math.exp %19 : vector<16x128xf32>
    %cst_6 = arith.constant dense<0.000000e+00> : vector<128xf32>
    %21 = vector.multi_reduction <add>, %20, %cst_6 [0] : vector<16x128xf32> to vector<128xf32>
    %22 = vector.shape_cast %21 : vector<128xf32> to vector<1x128xf32>
    %23 = math.log %22 : vector<1x128xf32>
    %24 = arith.addf %17, %23 : vector<1x128xf32>
    %25 = vector.extract_strided_slice %8 {offsets = [0, 0], sizes = [1, 128], strides = [1, 1]} : vector<3x128xf32> to vector<1x128xf32>
    %26 = vector.broadcast %25 : vector<1x128xf32> to vector<16x128xf32>
    %27 = arith.subf %13, %26 : vector<16x128xf32>
    %28 = math.absf %27 : vector<16x128xf32>
    %cst_7 = arith.constant 1.000000e+00 : f32
    %29 = vector.broadcast %cst_7 : f32 to vector<16x128xf32>
    %30 = arith.subf %29, %28 : vector<16x128xf32>
    %cst_8 = arith.constant 0.000000e+00 : f32
    %31 = vector.broadcast %cst_8 : f32 to vector<16x128xf32>
    %32 = arith.maximumf %30, %31 : vector<16x128xf32>
    %33 = arith.mulf %32, %15 : vector<16x128xf32>
    %cst_9 = arith.constant dense<0.000000e+00> : vector<128xf32>
    %34 = vector.multi_reduction <add>, %33, %cst_9 [0] : vector<16x128xf32> to vector<128xf32>
    %35 = vector.shape_cast %34 : vector<128xf32> to vector<1x128xf32>
    %36 = arith.subf %24, %35 : vector<1x128xf32>
    %37 = arith.addf %14, %36 : vector<1x128xf32>
    %38 = vector.extract_strided_slice %7 {offsets = [16, 0], sizes = [16, 128], strides = [1, 1]} : vector<32x128xf32> to vector<16x128xf32>
    %cst_10 = arith.constant dense<0xFF800000> : vector<128xf32>
    %39 = vector.multi_reduction <maximumf>, %38, %cst_10 [0] : vector<16x128xf32> to vector<128xf32>
    %40 = vector.shape_cast %39 : vector<128xf32> to vector<1x128xf32>
    %41 = vector.broadcast %40 : vector<1x128xf32> to vector<16x128xf32>
    %42 = arith.subf %38, %41 : vector<16x128xf32>
    %43 = math.exp %42 : vector<16x128xf32>
    %cst_11 = arith.constant dense<0.000000e+00> : vector<128xf32>
    %44 = vector.multi_reduction <add>, %43, %cst_11 [0] : vector<16x128xf32> to vector<128xf32>
    %45 = vector.shape_cast %44 : vector<128xf32> to vector<1x128xf32>
    %46 = math.log %45 : vector<1x128xf32>
    %47 = arith.addf %40, %46 : vector<1x128xf32>
    %48 = vector.extract_strided_slice %8 {offsets = [1, 0], sizes = [1, 128], strides = [1, 1]} : vector<3x128xf32> to vector<1x128xf32>
    %49 = vector.broadcast %48 : vector<1x128xf32> to vector<16x128xf32>
    %50 = arith.subf %13, %49 : vector<16x128xf32>
    %51 = math.absf %50 : vector<16x128xf32>
    %cst_12 = arith.constant 1.000000e+00 : f32
    %52 = vector.broadcast %cst_12 : f32 to vector<16x128xf32>
    %53 = arith.subf %52, %51 : vector<16x128xf32>
    %cst_13 = arith.constant 0.000000e+00 : f32
    %54 = vector.broadcast %cst_13 : f32 to vector<16x128xf32>
    %55 = arith.maximumf %53, %54 : vector<16x128xf32>
    %56 = arith.mulf %55, %38 : vector<16x128xf32>
    %cst_14 = arith.constant dense<0.000000e+00> : vector<128xf32>
    %57 = vector.multi_reduction <add>, %56, %cst_14 [0] : vector<16x128xf32> to vector<128xf32>
    %58 = vector.shape_cast %57 : vector<128xf32> to vector<1x128xf32>
    %59 = arith.subf %47, %58 : vector<1x128xf32>
    %60 = arith.addf %37, %59 : vector<1x128xf32>
    %cst_15 = arith.constant 5.000000e-01 : f32
    %61 = vector.broadcast %cst_15 : f32 to vector<1x128xf32>
    %62 = arith.mulf %60, %61 : vector<1x128xf32>
    %cst_16 = arith.constant 0.000000e+00 : f32
    %63 = vector.broadcast %cst_16 : f32 to vector<1x128xf32>
    %64 = arith.cmpf one, %11, %63 : vector<1x128xf32>
    %65 = arith.mulf %62, %11 : vector<1x128xf32>
    %cst_17 = arith.constant 0.000000e+00 : f32
    %66 = vector.broadcast %cst_17 : f32 to vector<1x128xf32>
    %67 = arith.select %64, %65, %66 : vector<1x128xi1>, vector<1x128xf32>
    %c0_18 = arith.constant 0 : index
    %c0_19 = arith.constant 0 : index
    %68 = vector.load %arg3[%c0_18, %c0_19] : memref<1x128xf32, #tpu.memory_space<vmem>>, vector<1x128xf32>
    tpu.vector_store %arg3[%c0_18, %c0_19], %67 {strides = array<i32>} : memref<1x128xf32, #tpu.memory_space<vmem>>, vector<1x128xf32>,
    return
  }
  func.func @transform_0(%arg0: i32) -> (i32, i32) {
    %c0_i32 = arith.constant 0 : i32
    %c0_i32_0 = arith.constant 0 : i32
    return %arg0, %c0_i32 : i32, i32
  }
  func.func @transform_1(%arg0: i32) -> (i32, i32) {
    %c0_i32 = arith.constant 0 : i32
    %c0_i32_0 = arith.constant 0 : i32
    return %c0_i32, %arg0 : i32, i32
  }
  func.func @transform_2(%arg0: i32) -> (i32, i32) {
    %c0_i32 = arith.constant 0 : i32
    %c0_i32_0 = arith.constant 0 : i32
    return %c0_i32, %arg0 : i32, i32
  }
}

</mosaic_0001>

<llo_original>
// kernel: tpu_custom_call.1
$region0: #{tpu_custom_call.1}
  #allocation0 [shape = 'u32[]', space=smem, size = 0x4, offset = 0x4, fixed_abs, tag = 'smem constant byte address 0x4 - core index']
  #allocation1 [shape = 'u32[144,128]{1,0:T(1,128)}', space=vmem, size = 0x12000, scoped, tag = 'internal scratch']
  %s0 = inlined_call_operand.vmem [shape: f32[128,32], index: 0, kind: input, shape index: {}]
  %s1 = inlined_call_operand.vmem [shape: f32[3,128], index: 1, kind: input, shape index: {}]
  %s2 = inlined_call_operand.hbm [shape: f32[1,128], index: 2, kind: output, shape index: {}]
  %s3 = sld [smem:[#allocation0]]
  $region18: #{tpu_custom_call.1} parent=0
    _
  %s5 = ssub.s32 1, %s3
  %s6 = scalar_select 0, %s5, %s3
  $region1: #{tpu_custom_call.1} parent=0
    #allocation2 [shape = 'u8[512]{0}', space=vmem, size = 0x400, scoped, tag = 'output window, operand 0, single buffered']
    #allocation3 [shape = 's32[1]{0}', space=sflag, size = 0x4, scoped, tag = 'scoped memory for tpu_custom_call.1']
    %7 = vsyncpa [#allocation3], 0
    // Predicated region
    $region2: #{tpu_custom_call.1} parent=1 // pred_check
      _
    $region3: #{tpu_custom_call.1} parent=1 // pred_check_branch
      %9 = sbr.rel (0) target = $region5
    $region4: #{tpu_custom_call.1} parent=1 // pred_region
      _
    $region5: #{tpu_custom_call.1} parent=1 // pred_fallthru
      _
    // Predicated region
    $region6: #{tpu_custom_call.1} parent=1 // pred_check
      _
    $region7: #{tpu_custom_call.1} parent=1 // pred_check_branch
      %11 = sbr.rel (0) target = $region9
    $region8: #{tpu_custom_call.1} parent=1 // pred_region
      _
    $region9: #{tpu_custom_call.1} parent=1 // pred_fallthru
      _
    %s12 = smul.u32 0, 128
    %v13 = vlaneseq
    %v14 = vand.u32 %v13, 127
    %v15 = vstv %s12
    %v16 = vadd.s32 %v15, %v14
    %vm17 = vcmp.lt.s32.totalorder %v16, 128
    %v18 = vld [vmem:[%s0] sm:$0xff]
    %v19 = vld [vmem:[%s0 + $0x8] sm:$0xff]
    %v20 = vld [vmem:[%s0 + $0x10] sm:$0xff]
    %v21 = vld [vmem:[%s0 + $0x18] sm:$0xff]
    %v22 = vld [vmem:[%s0 + $0x20] sm:$0xff]
    %v23 = vld [vmem:[%s0 + $0x28] sm:$0xff]
    %v24 = vld [vmem:[%s0 + $0x30] sm:$0xff]
    %v25 = vld [vmem:[%s0 + $0x38] sm:$0xff]
    %v26 = vld [vmem:[%s0 + $0x40] sm:$0xff]
    %v27 = vld [vmem:[%s0 + $0x48] sm:$0xff]
    %v28 = vld [vmem:[%s0 + $0x50] sm:$0xff]
    %v29 = vld [vmem:[%s0 + $0x58] sm:$0xff]
    %v30 = vld [vmem:[%s0 + $0x60] sm:$0xff]
    %v31 = vld [vmem:[%s0 + $0x68] sm:$0xff]
    %v32 = vld [vmem:[%s0 + $0x70] sm:$0xff]
    %v33 = vld [vmem:[%s0 + $0x78] sm:$0xff]
    %34 = vxpose.xlu0.b32.start [1/16] %v18, 128
    %35 = vxpose.xlu0.b32.cont [2/16] %v19, 128
    %36 = vxpose.xlu0.b32.cont [3/16] %v20, 128
    %37 = vxpose.xlu0.b32.cont [4/16] %v21, 128
    %38 = vxpose.xlu0.b32.cont [5/16] %v22, 128
    %39 = vxpose.xlu0.b32.cont [6/16] %v23, 128
    %40 = vxpose.xlu0.b32.cont [7/16] %v24, 128
    %41 = vxpose.xlu0.b32.cont [8/16] %v25, 128
    %42 = vxpose.xlu0.b32.cont [9/16] %v26, 128
    %43 = vxpose.xlu0.b32.cont [10/16] %v27, 128
    %44 = vxpose.xlu0.b32.cont [11/16] %v28, 128
    %45 = vxpose.xlu0.b32.cont [12/16] %v29, 128
    %46 = vxpose.xlu0.b32.cont [13/16] %v30, 128
    %47 = vxpose.xlu0.b32.cont [14/16] %v31, 128
    %48 = vxpose.xlu0.b32.cont [15/16] %v32, 128
    %49 = vxpose.xlu0.b32.end [16/16] %v33, 128
    %v50 = vpop.trf.xlu0
    %v51 = vpop.trf.xlu0
    %v52 = vpop.trf.xlu0
    %v53 = vpop.trf.xlu0
    %v54 = vpop.trf.xlu0
    %v55 = vpop.trf.xlu0
    %v56 = vpop.trf.xlu0
    %v57 = vpop.trf.xlu0
    %v58 = vpop.trf.xlu0
    %v59 = vpop.trf.xlu0
    %v60 = vpop.trf.xlu0
    %v61 = vpop.trf.xlu0
    %v62 = vpop.trf.xlu0
    %v63 = vpop.trf.xlu0
    %v64 = vpop.trf.xlu0
    %v65 = vpop.trf.xlu0
    %v66 = vld [vmem:[%s1] sm:$0x7]
    %v67 = vsel %vm17, %v66, 0.0
    %v68 = vlaneseq
    %v69 = vshrl.u32 %v68, 7
    %v70 = vadd.s32 %v69, 8
    %v71 = vcvt.s32.f32 %v69
    %v72 = vcvt.s32.f32 %v70
    %v73 = vmax.f32 %v50, %v51
    %v74 = vrot.slane %v73, 4
    %v75 = vmax.f32 %v73, %v74
    %v76 = vrot.slane %v75, 2
    %v77 = vmax.f32 %v75, %v76
    %v78 = vrot.slane %v77, 1
    %v79 = vmax.f32 %v77, %v78
    %v80 = vsub.f32 %v50, %v79
    %v81 = vsub.f32 %v51, %v79
    %v82 = vmul.f32 %v80, 1.442695
    %v83 = vpow.pop %v82
    %v84 = vmul.f32 %v81, 1.442695
    %v85 = vpow.pop %v84
    %v86 = vadd.f32 %v83, %v85
    %v87 = vrot.slane %v86, 4
    %v88 = vadd.f32 %v86, %v87
    %v89 = vrot.slane %v88, 2
    %v90 = vadd.f32 %v88, %v89
    %v91 = vrot.slane %v90, 1
    %v92 = vadd.f32 %v90, %v91
    %v93 = vlog2.pop %v92
    %v94 = vmul.f32 %v93, 0.6931472
    %v95 = vadd.f32 %v79, %v94
    %v96 = vlaneseq
    %v97 = vshrl.u32 %v96, 7
    %v98 = vsub.s32 0, %v97
    %v99 = vrot.slane %v66, %v98
    %v100 = vsub.f32 %v71, %v99
    %v101 = vsub.f32 %v72, %v99
    %v102 = vand.u32 2147483647, %v100
    %v103 = vand.u32 2147483647, %v101
    %v104 = vsub.f32 1.0, %v102
    %v105 = vsub.f32 1.0, %v103
    %v106 = vmax.f32 %v104, 0.0
    %v107 = vmax.f32 %v105, 0.0
    %v108 = vmul.f32 %v106, %v50
    %v109 = vmul.f32 %v107, %v51
    %v110 = vadd.f32 %v108, %v109
    %v111 = vrot.slane %v110, 4
    %v112 = vadd.f32 %v110, %v111
    %v113 = vrot.slane %v112, 2
    %v114 = vadd.f32 %v112, %v113
    %v115 = vrot.slane %v114, 1
    %v116 = vadd.f32 %v114, %v115
    %v117 = vsub.f32 %v95, %v116
    %v118 = vadd.f32 %v117, 0.0
    %v119 = vmax.f32 %v52, %v53
    %v120 = vrot.slane %v119, 4
    %v121 = vmax.f32 %v119, %v120
    %v122 = vrot.slane %v121, 2
    %v123 = vmax.f32 %v121, %v122
    %v124 = vrot.slane %v123, 1
    %v125 = vmax.f32 %v123, %v124
    %v126 = vsub.f32 %v52, %v125
    %v127 = vsub.f32 %v53, %v125
    %v128 = vmul.f32 %v126, 1.442695
    %v129 = vpow.pop %v128
    %v130 = vmul.f32 %v127, 1.442695
    %v131 = vpow.pop %v130
    %v132 = vadd.f32 %v129, %v131
    %v133 = vrot.slane %v132, 4
    %v134 = vadd.f32 %v132, %v133
    %v135 = vrot.slane %v134, 2
    %v136 = vadd.f32 %v134, %v135
    %v137 = vrot.slane %v136, 1
    %v138 = vadd.f32 %v136, %v137
    %v139 = vlog2.pop %v138
    %v140 = vmul.f32 %v139, 0.6931472
    %v141 = vadd.f32 %v125, %v140
    %v142 = vlaneseq
    %v143 = vshrl.u32 %v142, 7
    %v144 = vsub.s32 1, %v143
    %v145 = vrot.slane %v66, %v144
    %v146 = vsub.f32 %v71, %v145
    %v147 = vsub.f32 %v72, %v145
    %v148 = vand.u32 2147483647, %v146
    %v149 = vand.u32 2147483647, %v147
    %v150 = vsub.f32 1.0, %v148
    %v151 = vsub.f32 1.0, %v149
    %v152 = vmax.f32 %v150, 0.0
    %v153 = vmax.f32 %v151, 0.0
    %v154 = vmul.f32 %v152, %v52
    %v155 = vmul.f32 %v153, %v53
    %v156 = vadd.f32 %v154, %v155
    %v157 = vrot.slane %v156, 4
    %v158 = vadd.f32 %v156, %v157
    %v159 = vrot.slane %v158, 2
    %v160 = vadd.f32 %v158, %v159
    %v161 = vrot.slane %v160, 1
    %v162 = vadd.f32 %v160, %v161
    %v163 = vsub.f32 %v141, %v162
    %v164 = vadd.f32 %v118, %v163
    %v165 = vmul.f32 %v164, 0.5
    %vm166 = vcmp.ne.f32.partialorder %v67, 0.0
    %v167 = vmul.f32 %v165, %v67
    %v168 = vsel %vm166, %v167, 0.0
    %169 = vst [vmem:[#allocation2 - $0x2] sm:$0x4] %v168
    // Predicated region
    $region10: #{tpu_custom_call.1} parent=1 // pred_check
      _
    $region11: #{tpu_custom_call.1} parent=1 // pred_check_branch
      %171 = sbr.rel (0) target = $region13
    $region12: #{tpu_custom_call.1} parent=1 // pred_region
      %s173 = ssub.s32 16, 16
      %174 = vsyncadd [#allocation3], %s173
      %s176 = sshll.u32 [#allocation2], 4
      %s177 = int_to_ptr.vmem [resolvable:$true] %s176
      %179 = dma.vmem_to_hbm [thread:$0]  %s177, 16, %s2, [#allocation3]
    $region13: #{tpu_custom_call.1} parent=1 // pred_fallthru
      _
    // Predicated region
    $region14: #{tpu_custom_call.1} parent=1 // pred_check
      _
    $region15: #{tpu_custom_call.1} parent=1 // pred_check_branch
      %181 = sbr.rel (0) target = $region17
    $region16: #{tpu_custom_call.1} parent=1 // pred_region
      %182 = dma.done [#allocation3], 16
    $region17: #{tpu_custom_call.1} parent=1 // pred_fallthru
      _
    %183 = vsyncpa [#allocation3], 1

</llo_original>
